<compile_context>
chip_gen: v5e
topology: v5e:2x2
jax: 0.10.0
libtpu: 0.0.40
codegen_flags: <defaults>
</compile_context>

<pallas_src>
import functools

import jax
import jax.numpy as jnp
from jax import lax
from jax.experimental import pallas as pl
from jax.experimental.pallas import tpu as pltpu

LANES = 128
SUBLANES = 8
CHUNK_ROWS = 512                       # 512 x 128 x 4B = 256 KiB per f32 chunk temp
TARGET_TILE_BYTES = 2 * 1024 * 1024    # ~2 MiB of input bytes per buffer per step
NUM_CORES = 2                          # v7x has 2 TCs; harmless elsewhere


def _round_down(x, m):
    return (x // m) * m


def _pick_tiles(rows, itemsize, max_tile_rows=None):
    """Choose (tile_r, chunk_r): DMA row-tile and in-kernel compute row-chunk."""
    if rows <= SUBLANES:
        return rows, rows                                  # single full-extent block
    target = max(SUBLANES,
                 _round_down(TARGET_TILE_BYTES // (LANES * itemsize), SUBLANES))
    if max_tile_rows is not None:
        target = max(SUBLANES, min(target, _round_down(max_tile_rows, SUBLANES)))
    tile_r = min(target, _round_down(rows, SUBLANES))      # multiple of 8, <= rows
    if tile_r >= CHUNK_ROWS:
        tile_r = _round_down(tile_r, CHUNK_ROWS)
        chunk_r = CHUNK_ROWS
    else:
        chunk_r = tile_r
    return tile_r, chunk_r


def _dice_bce_kernel(p_ref, t_ref, out_ref, *, rows, tile_r, chunk_r,
                     steps_per_core):
    c = pl.program_id(0)               # "core" axis (parallel)
    i = pl.program_id(1)               # reduction steps on this core (arbitrary)

    @pl.when(i == 0)
    def _():
        out_ref[...] = jnp.zeros_like(out_ref)

    block_idx = c * steps_per_core + i          # UNCLAMPED global row-block index
    row_start = block_idx * tile_r

    # Constant MXU reduction matrix: rows of the (8,128) result each hold
    # column_sum/8, so summing the whole accumulator on the host gives the exact
    # column sum (division by 8 is exact in f32).
    red = jnp.full((SUBLANES, chunk_r), 0.125, jnp.float32)

    def accum(masked):
        def body(j, carry):
            off = pl.multiple_of(j * chunk_r, chunk_r)
            p = p_ref[pl.ds(off, chunk_r), :].astype(jnp.float32)
            t = t_ref[pl.ds(off, chunk_r), :].astype(jnp.float32)
            if masked:
                gid = row_start + off + lax.broadcasted_iota(
                    jnp.int32, (chunk_r, LANES), 0)
                valid = gid < rows
                p = jnp.where(valid, p, 0.0)
                t = jnp.where(valid, t, 0.0)
            pt = p * t
            ps = p + t
            # PyTorch BCELoss clamps each log at -100.
            log_p = jnp.maximum(jnp.log(p), -100.0)
            log_1mp = jnp.maximum(jnp.log(1.0 - p), -100.0)
            # Un-negated BCE contribution: t*log(p) + (1-t)*log(1-p).
            bce = t * (log_p - log_1mp) + log_1mp
            # Column reductions on the (otherwise idle) MXU.
            out_ref[0, 0] += jnp.dot(red, pt, preferred_element_type=jnp.float32)
            out_ref[0, 1] += jnp.dot(red, ps, preferred_element_type=jnp.float32)
            out_ref[0, 2] += jnp.dot(red, bce, preferred_element_type=jnp.float32)
            return carry
        lax.fori_loop(0, tile_r // chunk_r, body, 0)

    is_full = row_start + tile_r <= rows

    @pl.when(is_full)                  # hot path: no per-element mask cost
    def _():
        accum(masked=False)

    @pl.when(jnp.logical_not(is_full))  # ragged edge block / clamped OOB duplicate
    def _():
        accum(masked=True)


def dice_bce_loss(probs, targets, smooth=1.0, max_tile_rows=None):
    """DICE + BCE loss.  `probs` must already be probabilities in [0, 1] (the
    reference module feeds its first argument straight into nn.BCELoss).
    Returns (dice_loss, bce_loss, total_loss) as float32 scalars."""
    assert probs.shape == targets.shape
    total = probs.size
    rows = pl.cdiv(total, LANES)
    padded_total = rows * LANES

    p_flat = probs.reshape(-1)
    t_flat = targets.reshape(-1)
    if padded_total != total:
        # Only when `total` isn't lane-aligned: <=127 zero elements; zeros
        # contribute exactly 0 to all three sums (given the -100 log clamp).
        p_flat = jnp.pad(p_flat, (0, padded_total - total))
        t_flat = jnp.pad(t_flat, (0, padded_total - total))
    p2d = p_flat.reshape(rows, LANES)          # free bitcast reshape when no pad
    t2d = t_flat.reshape(rows, LANES)

    itemsize = max(p2d.dtype.itemsize, t2d.dtype.itemsize)
    tile_r, chunk_r = _pick_tiles(rows, itemsize, max_tile_rows)
    steps_total = pl.cdiv(rows, tile_r)
    num_cores = min(NUM_CORES, steps_total)
    steps_per_core = pl.cdiv(steps_total, num_cores)

    def idx_map(c, i):
        # Clamp the (at most one) fully out-of-range block of the last core to a
        # valid block; its contribution is masked to zero inside the kernel.
        return (jnp.minimum(c * steps_per_core + i, steps_total - 1), 0)

    kernel = functools.partial(
        _dice_bce_kernel, rows=rows, tile_r=tile_r, chunk_r=chunk_r,
        steps_per_core=steps_per_core)

    tile_in_bytes = tile_r * LANES * (p2d.dtype.itemsize + t2d.dtype.itemsize)
    out_bytes = num_cores * 3 * SUBLANES * LANES * 4

    parts = pl.pallas_call(
        kernel,
        out_shape=jax.ShapeDtypeStruct((num_cores, 3, SUBLANES, LANES),
                                       jnp.float32),
        grid_spec=pltpu.PrefetchScalarGridSpec(
            num_scalar_prefetch=0,
            grid=(num_cores, steps_per_core),
            in_specs=[
                pl.BlockSpec((tile_r, LANES), idx_map),
                pl.BlockSpec((tile_r, LANES), idx_map),
            ],
            out_specs=pl.BlockSpec((1, 3, SUBLANES, LANES),
                                   lambda c, i: (c, 0, 0, 0)),
        ),
        compiler_params=pltpu.CompilerParams(
            dimension_semantics=("parallel", "arbitrary"),
            # 2 inputs x 2 pipeline buffers + chunked-intermediate headroom.
            vmem_limit_bytes=int(2 * tile_in_bytes + 8 * 1024 * 1024),
        ),
        cost_estimate=pl.CostEstimate(
            flops=14 * padded_total,
            transcendentals=2 * padded_total,
            bytes_accessed=int(p2d.size * p2d.dtype.itemsize
                               + t2d.size * t2d.dtype.itemsize + out_bytes),
        ),
    )(p2d, t2d)

    sums = jnp.sum(parts, axis=(0, 2, 3))       # tiny host-side final reduce
    sum_pt, sum_ps, sum_bce = sums[0], sums[1], sums[2]
    smooth = float(smooth)
    dice_loss = 1.0 - (2.0 * sum_pt + smooth) / (sum_ps + smooth)
    bce_loss = -sum_bce / total
    return dice_loss, bce_loss, dice_loss + bce_loss


def _reference(probs, targets, smooth=1.0):
    p = probs.astype(jnp.float32)
    t = targets.astype(jnp.float32)
    intersection = 2.0 * jnp.sum(p * t) + smooth
    union = jnp.sum(p + t) + smooth
    dice = 1.0 - intersection / union
    log_p = jnp.maximum(jnp.log(p), -100.0)
    log_1mp = jnp.maximum(jnp.log(1.0 - p), -100.0)
    bce = jnp.mean(-(t * log_p + (1.0 - t) * log_1mp))
    return dice, bce, dice + bce


if __name__ == "__main__":
    key = jax.random.PRNGKey(0)
    k1, k2, k3, k4, k5, k6 = jax.random.split(key, 6)

    # Case 1: small NCHW, lane-aligned (no host pad, single tile).
    N, C, H, W = 2, 4, 16, 16
    probs = jax.nn.sigmoid(jax.random.normal(k1, (N, C, H, W), jnp.float32))
    targets = jax.random.bernoulli(k2, 0.5, (N, C, H, W)).astype(jnp.float32)
    dice, bce, tot = dice_bce_loss(probs, targets, smooth=1.0)
    jax.block_until_ready(tot)
    print(f"DICE Loss: {float(dice)}")
    print(f"BCE Loss: {float(bce)}")
    r = _reference(probs, targets, 1.0)
    assert jnp.allclose(dice, r[0], rtol=1e-5, atol=1e-6)
    assert jnp.allclose(bce, r[1], rtol=1e-5, atol=1e-6)
    assert jnp.allclose(tot, r[2], rtol=1e-5, atol=1e-6)

    # Case 2: ragged bf16 NCHW (lane-pad tail + in-kernel row masking, 2 blocks).
    p_odd = jax.nn.sigmoid(
        jax.random.normal(k3, (3, 5, 7, 11), jnp.float32)).astype(jnp.bfloat16)
    t_odd = jax.random.bernoulli(k4, 0.5, (3, 5, 7, 11)).astype(jnp.bfloat16)
    d2, b2, t2 = dice_bce_loss(p_odd, t_odd, smooth=1.0)
    jax.block_until_ready(t2)
    r2 = _reference(p_odd, t_odd, 1.0)
    assert jnp.allclose(d2, r2[0], rtol=1e-3, atol=1e-4)
    assert jnp.allclose(b2, r2[1], rtol=1e-3, atol=1e-4)
    assert jnp.allclose(t2, r2[2], rtol=1e-3, atol=1e-4)

    # Case 3: odd block count with a forced small tile -> exercises the clamped
    # fully-out-of-range duplicate block plus the masked partial edge block.
    p3 = jax.nn.sigmoid(jax.random.normal(k5, (4, 5, 128), jnp.float32))
    t3 = jax.random.bernoulli(k6, 0.5, (4, 5, 128)).astype(jnp.float32)
    d3, b3, tot3 = dice_bce_loss(p3, t3, smooth=1.0, max_tile_rows=8)
    jax.block_until_ready(tot3)
    r3 = _reference(p3, t3, 1.0)
    assert jnp.allclose(d3, r3[0], rtol=1e-5, atol=1e-6)
    assert jnp.allclose(b3, r3[1], rtol=1e-5, atol=1e-6)
    assert jnp.allclose(tot3, r3[2], rtol=1e-5, atol=1e-6)

    print("KERNEL_OK")
</pallas_src>

<mosaic_0001>
module attributes {stable_mosaic.version = 11 : i64} {
  func.func @_dice_bce_kernel(%arg0: i32, %arg1: i32, %arg2: memref<16x128xf32, #tpu.memory_space<vmem>>, %arg3: memref<16x128xf32, #tpu.memory_space<vmem>>, %arg4: memref<1x3x8x128xf32, #tpu.memory_space<vmem>>) attributes {dimension_semantics = [#tpu.dimension_semantics<parallel>, #tpu.dimension_semantics<arbitrary>], iteration_bounds = array<i64: 1, 1>, scalar_prefetch = 0 : i64, scratch_operands = 0 : i64, tpu.core_type = #tpu.core_type<tc>, window_params = [{transform_indices = @transform_0, window_bounds = array<i64: 16, 128>}, {transform_indices = @transform_1, window_bounds = array<i64: 16, 128>}, {transform_indices = @transform_2, window_bounds = array<i64: 1, 3, 8, 128>}]} {
    %c0_i32 = arith.constant 0 : i32
    %0 = arith.cmpi eq, %arg1, %c0_i32 : i32
    %1 = arith.extui %0 : i1 to i32
    %c0_i32_0 = arith.constant 0 : i32
    %2 = arith.cmpi ne, %1, %c0_i32_0 : i32
    scf.if %2 {
      %cst_5 = arith.constant 0.000000e+00 : f32
      %14 = vector.broadcast %cst_5 : f32 to vector<1x3x8x128xf32>
      %c0 = arith.constant 0 : index
      %c0_6 = arith.constant 0 : index
      %c0_7 = arith.constant 0 : index
      %c0_8 = arith.constant 0 : index
      %15 = vector.load %arg4[%c0, %c0_6, %c0_7, %c0_8] : memref<1x3x8x128xf32, #tpu.memory_space<vmem>>, vector<1x3x8x128xf32>
      tpu.vector_store %arg4[%c0, %c0_6, %c0_7, %c0_8], %14 {strides = array<i32>} : memref<1x3x8x128xf32, #tpu.memory_space<vmem>>, vector<1x3x8x128xf32>,
    } else {
    }
    %c1_i32 = arith.constant 1 : i32
    %3 = arith.muli %arg0, %c1_i32 : i32
    %4 = arith.addi %3, %arg1 : i32
    %c16_i32 = arith.constant 16 : i32
    %5 = arith.muli %4, %c16_i32 : i32
    %cst = arith.constant 1.250000e-01 : f32
    %6 = vector.broadcast %cst : f32 to vector<8x16xf32>
    %c16_i32_1 = arith.constant 16 : i32
    %7 = arith.addi %5, %c16_i32_1 : i32
    %c16_i32_2 = arith.constant 16 : i32
    %8 = arith.cmpi sle, %7, %c16_i32_2 : i32
    %9 = arith.extui %8 : i1 to i32
    %c0_i32_3 = arith.constant 0 : i32
    %10 = arith.cmpi ne, %9, %c0_i32_3 : i32
    scf.if %10 {
      %c0_i32_5 = arith.constant 0 : i32
      %c16_i32_6 = arith.constant 16 : i32
      %14 = arith.muli %c0_i32_5, %c16_i32_6 : i32
      %15 = tpu.assume_multiple %14, 16 : i32
      %16 = arith.index_cast %15 : i32 to index
      %c0 = arith.constant 0 : index
      %17 = vector.load %arg2[%16, %c0] : memref<16x128xf32, #tpu.memory_space<vmem>>, vector<16x128xf32>
      %18 = arith.index_cast %15 : i32 to index
      %c0_7 = arith.constant 0 : index
      %19 = vector.load %arg3[%18, %c0_7] : memref<16x128xf32, #tpu.memory_space<vmem>>, vector<16x128xf32>
      %20 = arith.mulf %17, %19 : vector<16x128xf32>
      %21 = arith.addf %17, %19 : vector<16x128xf32>
      %22 = math.log %17 : vector<16x128xf32>
      %cst_8 = arith.constant -1.000000e+02 : f32
      %23 = vector.broadcast %cst_8 : f32 to vector<16x128xf32>
      %24 = arith.maximumf %22, %23 : vector<16x128xf32>
      %cst_9 = arith.constant 1.000000e+00 : f32
      %25 = vector.broadcast %cst_9 : f32 to vector<16x128xf32>
      %26 = arith.subf %25, %17 : vector<16x128xf32>
      %27 = math.log %26 : vector<16x128xf32>
      %cst_10 = arith.constant -1.000000e+02 : f32
      %28 = vector.broadcast %cst_10 : f32 to vector<16x128xf32>
      %29 = arith.maximumf %27, %28 : vector<16x128xf32>
      %30 = arith.subf %24, %29 : vector<16x128xf32>
      %31 = arith.mulf %19, %30 : vector<16x128xf32>
      %32 = arith.addf %31, %29 : vector<16x128xf32>
      %c0_11 = arith.constant 0 : index
      %c0_12 = arith.constant 0 : index
      %c0_13 = arith.constant 0 : index
      %c0_14 = arith.constant 0 : index
      %33 = vector.load %arg4[%c0_11, %c0_12, %c0_13, %c0_14] : memref<1x3x8x128xf32, #tpu.memory_space<vmem>>, vector<1x1x8x128xf32>
      %34 = vector.shape_cast %33 : vector<1x1x8x128xf32> to vector<8x128xf32>
      %cst_15 = arith.constant dense<0.000000e+00> : vector<8x128xf32>
      %35 = tpu.matmul %6, %20, %cst_15 {dimension_numbers = #tpu.dot_dimension_numbers<[1], [0], [0], [1], [0, 0, 1, 1], [], []>} : vector<8x16xf32>, vector<16x128xf32>, vector<8x128xf32> -> vector<8x128xf32>
      %36 = arith.addf %34, %35 : vector<8x128xf32>
      %c0_16 = arith.constant 0 : index
      %c0_17 = arith.constant 0 : index
      %c0_18 = arith.constant 0 : index
      %c0_19 = arith.constant 0 : index
      %37 = vector.load %arg4[%c0_16, %c0_17, %c0_18, %c0_19] : memref<1x3x8x128xf32, #tpu.memory_space<vmem>>, vector<1x1x8x128xf32>
      %38 = vector.shape_cast %37 : vector<1x1x8x128xf32> to vector<8x128xf32>
      %39 = vector.shape_cast %36 : vector<8x128xf32> to vector<1x1x8x128xf32>
      tpu.vector_store %arg4[%c0_16, %c0_17, %c0_18, %c0_19], %39 {strides = array<i32>} : memref<1x3x8x128xf32, #tpu.memory_space<vmem>>, vector<1x1x8x128xf32>,
      %c0_20 = arith.constant 0 : index
      %c1 = arith.constant 1 : index
      %c0_21 = arith.constant 0 : index
      %c0_22 = arith.constant 0 : index
      %40 = vector.load %arg4[%c0_20, %c1, %c0_21, %c0_22] : memref<1x3x8x128xf32, #tpu.memory_space<vmem>>, vector<1x1x8x128xf32>
      %41 = vector.shape_cast %40 : vector<1x1x8x128xf32> to vector<8x128xf32>
      %cst_23 = arith.constant dense<0.000000e+00> : vector<8x128xf32>
      %42 = tpu.matmul %6, %21, %cst_23 {dimension_numbers = #tpu.dot_dimension_numbers<[1], [0], [0], [1], [0, 0, 1, 1], [], []>} : vector<8x16xf32>, vector<16x128xf32>, vector<8x128xf32> -> vector<8x128xf32>
      %43 = arith.addf %41, %42 : vector<8x128xf32>
      %c0_24 = arith.constant 0 : index
      %c1_25 = arith.constant 1 : index
      %c0_26 = arith.constant 0 : index
      %c0_27 = arith.constant 0 : index
      %44 = vector.load %arg4[%c0_24, %c1_25, %c0_26, %c0_27] : memref<1x3x8x128xf32, #tpu.memory_space<vmem>>, vector<1x1x8x128xf32>
      %45 = vector.shape_cast %44 : vector<1x1x8x128xf32> to vector<8x128xf32>
      %46 = vector.shape_cast %43 : vector<8x128xf32> to vector<1x1x8x128xf32>
      tpu.vector_store %arg4[%c0_24, %c1_25, %c0_26, %c0_27], %46 {strides = array<i32>} : memref<1x3x8x128xf32, #tpu.memory_space<vmem>>, vector<1x1x8x128xf32>,
      %c0_28 = arith.constant 0 : index
      %c2 = arith.constant 2 : index
      %c0_29 = arith.constant 0 : index
      %c0_30 = arith.constant 0 : index
      %47 = vector.load %arg4[%c0_28, %c2, %c0_29, %c0_30] : memref<1x3x8x128xf32, #tpu.memory_space<vmem>>, vector<1x1x8x128xf32>
      %48 = vector.shape_cast %47 : vector<1x1x8x128xf32> to vector<8x128xf32>
      %cst_31 = arith.constant dense<0.000000e+00> : vector<8x128xf32>
      %49 = tpu.matmul %6, %32, %cst_31 {dimension_numbers = #tpu.dot_dimension_numbers<[1], [0], [0], [1], [0, 0, 1, 1], [], []>} : vector<8x16xf32>, vector<16x128xf32>, vector<8x128xf32> -> vector<8x128xf32>
      %50 = arith.addf %48, %49 : vector<8x128xf32>
      %c0_32 = arith.constant 0 : index
      %c2_33 = arith.constant 2 : index
      %c0_34 = arith.constant 0 : index
      %c0_35 = arith.constant 0 : index
      %51 = vector.load %arg4[%c0_32, %c2_33, %c0_34, %c0_35] : memref<1x3x8x128xf32, #tpu.memory_space<vmem>>, vector<1x1x8x128xf32>
      %52 = vector.shape_cast %51 : vector<1x1x8x128xf32> to vector<8x128xf32>
      %53 = vector.shape_cast %50 : vector<8x128xf32> to vector<1x1x8x128xf32>
      tpu.vector_store %arg4[%c0_32, %c2_33, %c0_34, %c0_35], %53 {strides = array<i32>} : memref<1x3x8x128xf32, #tpu.memory_space<vmem>>, vector<1x1x8x128xf32>,
      %c1_i32_36 = arith.constant 1 : i32
    } else {
    }
    %true = arith.constant true
    %11 = arith.xori %8, %true : i1
    %12 = arith.extui %11 : i1 to i32
    %c0_i32_4 = arith.constant 0 : i32
    %13 = arith.cmpi ne, %12, %c0_i32_4 : i32
    scf.if %13 {
      %c0_i32_5 = arith.constant 0 : i32
      %c16_i32_6 = arith.constant 16 : i32
      %14 = arith.muli %c0_i32_5, %c16_i32_6 : i32
      %15 = tpu.assume_multiple %14, 16 : i32
      %16 = arith.index_cast %15 : i32 to index
      %c0 = arith.constant 0 : index
      %17 = vector.load %arg2[%16, %c0] : memref<16x128xf32, #tpu.memory_space<vmem>>, vector<16x128xf32>
      %18 = arith.index_cast %15 : i32 to index
      %c0_7 = arith.constant 0 : index
      %19 = vector.load %arg3[%18, %c0_7] : memref<16x128xf32, #tpu.memory_space<vmem>>, vector<16x128xf32>
      %20 = arith.addi %5, %15 : i32
      %21 = tpu.iota {dimensions = array<i32: 0>} : vector<16x128xi32>
      %22 = vector.broadcast %20 : i32 to vector<16x128xi32>
      %23 = arith.addi %22, %21 : vector<16x128xi32>
      %c16_i32_8 = arith.constant 16 : i32
      %24 = vector.broadcast %c16_i32_8 : i32 to vector<16x128xi32>
      %25 = arith.cmpi slt, %23, %24 : vector<16x128xi32>
      %cst_9 = arith.constant 0.000000e+00 : f32
      %26 = vector.broadcast %cst_9 : f32 to vector<16x128xf32>
      %27 = arith.select %25, %17, %26 : vector<16x128xi1>, vector<16x128xf32>
      %cst_10 = arith.constant 0.000000e+00 : f32
      %28 = vector.broadcast %cst_10 : f32 to vector<16x128xf32>
      %29 = arith.select %25, %19, %28 : vector<16x128xi1>, vector<16x128xf32>
      %30 = arith.mulf %27, %29 : vector<16x128xf32>
      %31 = arith.addf %27, %29 : vector<16x128xf32>
      %32 = math.log %27 : vector<16x128xf32>
      %cst_11 = arith.constant -1.000000e+02 : f32
      %33 = vector.broadcast %cst_11 : f32 to vector<16x128xf32>
      %34 = arith.maximumf %32, %33 : vector<16x128xf32>
      %cst_12 = arith.constant 1.000000e+00 : f32
      %35 = vector.broadcast %cst_12 : f32 to vector<16x128xf32>
      %36 = arith.subf %35, %27 : vector<16x128xf32>
      %37 = math.log %36 : vector<16x128xf32>
      %cst_13 = arith.constant -1.000000e+02 : f32
      %38 = vector.broadcast %cst_13 : f32 to vector<16x128xf32>
      %39 = arith.maximumf %37, %38 : vector<16x128xf32>
      %40 = arith.subf %34, %39 : vector<16x128xf32>
      %41 = arith.mulf %29, %40 : vector<16x128xf32>
      %42 = arith.addf %41, %39 : vector<16x128xf32>
      %c0_14 = arith.constant 0 : index
      %c0_15 = arith.constant 0 : index
      %c0_16 = arith.constant 0 : index
      %c0_17 = arith.constant 0 : index
      %43 = vector.load %arg4[%c0_14, %c0_15, %c0_16, %c0_17] : memref<1x3x8x128xf32, #tpu.memory_space<vmem>>, vector<1x1x8x128xf32>
      %44 = vector.shape_cast %43 : vector<1x1x8x128xf32> to vector<8x128xf32>
      %cst_18 = arith.constant dense<0.000000e+00> : vector<8x128xf32>
      %45 = tpu.matmul %6, %30, %cst_18 {dimension_numbers = #tpu.dot_dimension_numbers<[1], [0], [0], [1], [0, 0, 1, 1], [], []>} : vector<8x16xf32>, vector<16x128xf32>, vector<8x128xf32> -> vector<8x128xf32>
      %46 = arith.addf %44, %45 : vector<8x128xf32>
      %c0_19 = arith.constant 0 : index
      %c0_20 = arith.constant 0 : index
      %c0_21 = arith.constant 0 : index
      %c0_22 = arith.constant 0 : index
      %47 = vector.load %arg4[%c0_19, %c0_20, %c0_21, %c0_22] : memref<1x3x8x128xf32, #tpu.memory_space<vmem>>, vector<1x1x8x128xf32>
      %48 = vector.shape_cast %47 : vector<1x1x8x128xf32> to vector<8x128xf32>
      %49 = vector.shape_cast %46 : vector<8x128xf32> to vector<1x1x8x128xf32>
      tpu.vector_store %arg4[%c0_19, %c0_20, %c0_21, %c0_22], %49 {strides = array<i32>} : memref<1x3x8x128xf32, #tpu.memory_space<vmem>>, vector<1x1x8x128xf32>,
      %c0_23 = arith.constant 0 : index
      %c1 = arith.constant 1 : index
      %c0_24 = arith.constant 0 : index
      %c0_25 = arith.constant 0 : index
      %50 = vector.load %arg4[%c0_23, %c1, %c0_24, %c0_25] : memref<1x3x8x128xf32, #tpu.memory_space<vmem>>, vector<1x1x8x128xf32>
      %51 = vector.shape_cast %50 : vector<1x1x8x128xf32> to vector<8x128xf32>
      %cst_26 = arith.constant dense<0.000000e+00> : vector<8x128xf32>
      %52 = tpu.matmul %6, %31, %cst_26 {dimension_numbers = #tpu.dot_dimension_numbers<[1], [0], [0], [1], [0, 0, 1, 1], [], []>} : vector<8x16xf32>, vector<16x128xf32>, vector<8x128xf32> -> vector<8x128xf32>
      %53 = arith.addf %51, %52 : vector<8x128xf32>
      %c0_27 = arith.constant 0 : index
      %c1_28 = arith.constant 1 : index
      %c0_29 = arith.constant 0 : index
      %c0_30 = arith.constant 0 : index
      %54 = vector.load %arg4[%c0_27, %c1_28, %c0_29, %c0_30] : memref<1x3x8x128xf32, #tpu.memory_space<vmem>>, vector<1x1x8x128xf32>
      %55 = vector.shape_cast %54 : vector<1x1x8x128xf32> to vector<8x128xf32>
      %56 = vector.shape_cast %53 : vector<8x128xf32> to vector<1x1x8x128xf32>
      tpu.vector_store %arg4[%c0_27, %c1_28, %c0_29, %c0_30], %56 {strides = array<i32>} : memref<1x3x8x128xf32, #tpu.memory_space<vmem>>, vector<1x1x8x128xf32>,
      %c0_31 = arith.constant 0 : index
      %c2 = arith.constant 2 : index
      %c0_32 = arith.constant 0 : index
      %c0_33 = arith.constant 0 : index
      %57 = vector.load %arg4[%c0_31, %c2, %c0_32, %c0_33] : memref<1x3x8x128xf32, #tpu.memory_space<vmem>>, vector<1x1x8x128xf32>
      %58 = vector.shape_cast %57 : vector<1x1x8x128xf32> to vector<8x128xf32>
      %cst_34 = arith.constant dense<0.000000e+00> : vector<8x128xf32>
      %59 = tpu.matmul %6, %42, %cst_34 {dimension_numbers = #tpu.dot_dimension_numbers<[1], [0], [0], [1], [0, 0, 1, 1], [], []>} : vector<8x16xf32>, vector<16x128xf32>, vector<8x128xf32> -> vector<8x128xf32>
      %60 = arith.addf %58, %59 : vector<8x128xf32>
      %c0_35 = arith.constant 0 : index
      %c2_36 = arith.constant 2 : index
      %c0_37 = arith.constant 0 : index
      %c0_38 = arith.constant 0 : index
      %61 = vector.load %arg4[%c0_35, %c2_36, %c0_37, %c0_38] : memref<1x3x8x128xf32, #tpu.memory_space<vmem>>, vector<1x1x8x128xf32>
      %62 = vector.shape_cast %61 : vector<1x1x8x128xf32> to vector<8x128xf32>
      %63 = vector.shape_cast %60 : vector<8x128xf32> to vector<1x1x8x128xf32>
      tpu.vector_store %arg4[%c0_35, %c2_36, %c0_37, %c0_38], %63 {strides = array<i32>} : memref<1x3x8x128xf32, #tpu.memory_space<vmem>>, vector<1x1x8x128xf32>,
      %c1_i32_39 = arith.constant 1 : i32
    } else {
    }
    return
  }
  func.func @transform_0(%arg0: i32, %arg1: i32) -> (i32, i32) {
    %c1_i32 = arith.constant 1 : i32
    %0 = arith.muli %arg0, %c1_i32 : i32
    %1 = arith.addi %0, %arg1 : i32
    %c0_i32 = arith.constant 0 : i32
    %2 = arith.minsi %1, %c0_i32 : i32
    %c0_i32_0 = arith.constant 0 : i32
    %c0_i32_1 = arith.constant 0 : i32
    return %2, %c0_i32_0 : i32, i32
  }
  func.func @transform_1(%arg0: i32, %arg1: i32) -> (i32, i32) {
    %c1_i32 = arith.constant 1 : i32
    %0 = arith.muli %arg0, %c1_i32 : i32
    %1 = arith.addi %0, %arg1 : i32
    %c0_i32 = arith.constant 0 : i32
    %2 = arith.minsi %1, %c0_i32 : i32
    %c0_i32_0 = arith.constant 0 : i32
    %c0_i32_1 = arith.constant 0 : i32
    return %2, %c0_i32_0 : i32, i32
  }
  func.func @transform_2(%arg0: i32, %arg1: i32) -> (i32, i32, i32, i32) {
    %c0_i32 = arith.constant 0 : i32
    %c0_i32_0 = arith.constant 0 : i32
    %c0_i32_1 = arith.constant 0 : i32
    %c0_i32_2 = arith.constant 0 : i32
    return %arg0, %c0_i32, %c0_i32_0, %c0_i32_1 : i32, i32, i32, i32
  }
}

</mosaic_0001>

<llo_original>
// kernel: tpu_custom_call.1
$region0: #{tpu_custom_call.1}
  #allocation0 [shape = 'u32[]', space=smem, size = 0x4, offset = 0x4, fixed_abs, tag = 'smem constant byte address 0x4 - core index']
  #allocation1 [shape = 'u32[72,128]{1,0:T(1,128)}', space=vmem, size = 0x9000, scoped, tag = 'internal scratch']
  %s0 = inlined_call_operand.hbm [shape: f32[16,128], index: 0, kind: input, shape index: {}]
  %s1 = inlined_call_operand.hbm [shape: f32[16,128], index: 1, kind: input, shape index: {}]
  %s2 = inlined_call_operand.hbm [shape: f32[1,3,8,128], index: 2, kind: output, shape index: {}]
  %s3 = sld [smem:[#allocation0]]
  $region38: #{tpu_custom_call.1} parent=0
    _
  %s5 = ssub.s32 1, %s3
  %s6 = scalar_select 0, %s5, %s3
  $region1: #{tpu_custom_call.1} parent=0
    #allocation2 [shape = 'u8[8192]{0}', space=vmem, size = 0x2000, scoped, tag = 'input window, operand 0, single buffered']
    #allocation3 [shape = 's32[1]{0}', space=sflag, size = 0x4, scoped, tag = 'scoped memory for tpu_custom_call.1']
    #allocation4 [shape = 's32[1]{0}', space=sflag, size = 0x4, scoped, tag = 'scoped memory for tpu_custom_call.1']
    #allocation5 [shape = 'u8[8192]{0}', space=vmem, size = 0x2000, scoped, tag = 'input window, operand 1, single buffered']
    #allocation6 [shape = 's32[1]{0}', space=sflag, size = 0x4, scoped, tag = 'scoped memory for tpu_custom_call.1']
    #allocation7 [shape = 'u8[12288]{0}', space=vmem, size = 0x3000, scoped, tag = 'output window, operand 0, single buffered']
    %7 = vsyncpa [#allocation3], 0
    %8 = vsyncpa [#allocation6], 0
    %9 = vsyncpa [#allocation4], 0
    // Predicated region
    $region2: #{tpu_custom_call.1} parent=1 // pred_check
      _
    $region3: #{tpu_custom_call.1} parent=1 // pred_check_branch
      %11 = sbr.rel (0) target = $region5
    $region4: #{tpu_custom_call.1} parent=1 // pred_region
      %s12 = sadd.s32 0, 0
      %p13 = scmp.lt.s32.totalorder %s12, 0
      %s14 = scalar_select %p13, %s12, 0
      %s15 = smul.u32 2, %s14
      %17 = vsyncadd [#allocation3], 0
      %s18 = smul.addr %s15, 8
      %s19 = scalar_lea.hbm %s0, %s18
      %s20 = sshll.u32 %s19, 4
      %s21 = int_to_ptr.hbm [resolvable:$true] %s20
      %s22 = sshll.u32 [#allocation2], 4
      %s23 = int_to_ptr.vmem [resolvable:$true] %s22
      %28 = dma.hbm_to_vmem [thread:$0]  %s21, 256, %s23, [#allocation3], 128, 128, 8
    $region5: #{tpu_custom_call.1} parent=1 // pred_fallthru
      _
    // Predicated region
    $region6: #{tpu_custom_call.1} parent=1 // pred_check
      _
    $region7: #{tpu_custom_call.1} parent=1 // pred_check_branch
      %30 = sbr.rel (0) target = $region9
    $region8: #{tpu_custom_call.1} parent=1 // pred_region
      %s31 = sadd.s32 0, 0
      %p32 = scmp.lt.s32.totalorder %s31, 0
      %s33 = scalar_select %p32, %s31, 0
      %s34 = smul.u32 2, %s33
      %36 = vsyncadd [#allocation6], 0
      %s37 = smul.addr %s34, 8
      %s38 = scalar_lea.hbm %s1, %s37
      %s39 = sshll.u32 %s38, 4
      %s40 = int_to_ptr.hbm [resolvable:$true] %s39
      %s41 = sshll.u32 [#allocation5], 4
      %s42 = int_to_ptr.vmem [resolvable:$true] %s41
      %47 = dma.hbm_to_vmem [thread:$0]  %s40, 256, %s42, [#allocation6], 128, 128, 8
    $region9: #{tpu_custom_call.1} parent=1 // pred_fallthru
      _
    // Predicated region
    $region10: #{tpu_custom_call.1} parent=1 // pred_check
      _
    $region11: #{tpu_custom_call.1} parent=1 // pred_check_branch
      %49 = sbr.rel (0) target = $region13
    $region12: #{tpu_custom_call.1} parent=1 // pred_region
      %51 = dma.done [#allocation3], 256
    $region13: #{tpu_custom_call.1} parent=1 // pred_fallthru
      _
    // Predicated region
    $region14: #{tpu_custom_call.1} parent=1 // pred_check
      _
    $region15: #{tpu_custom_call.1} parent=1 // pred_check_branch
      %53 = sbr.rel (0) target = $region17
    $region16: #{tpu_custom_call.1} parent=1 // pred_region
      %55 = dma.done [#allocation6], 256
    $region17: #{tpu_custom_call.1} parent=1 // pred_fallthru
      _
    %s56 = sadd.s32 0, 0
    %p57 = scmp.lt.s32.totalorder %s56, 0
    %s58 = scalar_select %p57, %s56, 0
    %s59 = smul.u32 2, %s58
    %s60 = sadd.s32 0, 0
    %p61 = scmp.lt.s32.totalorder %s60, 0
    %s62 = scalar_select %p61, %s60, 0
    %s63 = smul.u32 2, %s62
    %p64 = scmp.eq.s32.totalorder 0, 0
    // Predicated region
    $region18: #{tpu_custom_call.1} parent=1 // pred_check
      %p65 = pneg %p64
    $region19: #{tpu_custom_call.1} parent=1 // pred_check_branch
      %67 = sbr.rel (%p65) target = $region21
    $region20: #{tpu_custom_call.1} parent=1 // pred_region
      %68 = vst [vmem:[#allocation7] sm:$0xff] 0.0
      %69 = vst [vmem:[#allocation7 + $0x8] sm:$0xff] 0.0
      %70 = vst [vmem:[#allocation7 + $0x10] sm:$0xff] 0.0
    $region21: #{tpu_custom_call.1} parent=1 // pred_fallthru
      _
    %s71 = sadd.s32 0, 0
    %s72 = smul.u32 %s71, 16
    %s73 = sadd.s32 %s72, 16
    %p74 = scmp.le.s32.totalorder %s73, 16
    // Predicated region
    $region22: #{tpu_custom_call.1} parent=1 // pred_check
      %p75 = pneg %p74
    $region23: #{tpu_custom_call.1} parent=1 // pred_check_branch
      %77 = sbr.rel (%p75) target = $region25
    $region24: #{tpu_custom_call.1} parent=1 // pred_region
      %v78 = vld [vmem:[#allocation2] sm:$0xff]
      %v79 = vld [vmem:[#allocation2 + $0x8] sm:$0xff]
      %v80 = vld [vmem:[#allocation5] sm:$0xff]
      %v81 = vld [vmem:[#allocation5 + $0x8] sm:$0xff]
      %v82 = vmul.f32 %v78, %v80
      %v83 = vmul.f32 %v79, %v81
      %v84 = vadd.f32 %v78, %v80
      %v85 = vadd.f32 %v79, %v81
      %v86 = vlog2.pop %v78
      %v87 = vmul.f32 %v86, 0.6931472
      %v88 = vlog2.pop %v79
      %v89 = vmul.f32 %v88, 0.6931472
      %v90 = vmax.f32 %v87, -100.0
      %v91 = vmax.f32 %v89, -100.0
      %v92 = vsub.f32 1.0, %v78
      %v93 = vsub.f32 1.0, %v79
      %v94 = vlog2.pop %v92
      %v95 = vmul.f32 %v94, 0.6931472
      %v96 = vlog2.pop %v93
      %v97 = vmul.f32 %v96, 0.6931472
      %v98 = vmax.f32 %v95, -100.0
      %v99 = vmax.f32 %v97, -100.0
      %v100 = vsub.f32 %v90, %v98
      %v101 = vsub.f32 %v91, %v99
      %v102 = vmul.f32 %v80, %v100
      %v103 = vmul.f32 %v81, %v101
      %v104 = vadd.f32 %v102, %v98
      %v105 = vadd.f32 %v103, %v99
      %v106 = vld [vmem:[#allocation7] sm:$0xff]
      %vm107 = vcmask 130048
      %v109 = vsel %vm107, 0.125, 0
      %111 = vmatpush.msra.mxu0 0.0
      %112 = vmatpush.msra.mxu0 0.0
      %113 = vmatpush.msra.mxu0 0.0
      %114 = vmatpush.msra.mxu0 0.0
      %115 = vmatpush.msra.mxu0 0.0
      %116 = vmatpush.msra.mxu0 0.0
      %117 = vmatpush.msra.mxu0 0.0
      %118 = vmatpush.msra.mxu0 0.0
      %119 = vmatpush.msra.mxu0 0.0
      %120 = vmatpush.msra.mxu0 0.0
      %121 = vmatpush.msra.mxu0 0.0
      %122 = vmatpush.msra.mxu0 0.0
      %123 = vmatpush.msra.mxu0 0.0
      %124 = vmatpush.msra.mxu0 0.0
      %125 = vmatpush.msra.mxu0 %v83
      %126 = vmatpush.msra.mxu0 %v82
      %127 = vmatmul.f32.gmra.mxu0 %v109
      %v128 = vpop.f32.mrf.mxu0
      %v129 = vadd.f32 0.0, %v128
      %130 = vdwg.mxu0
      %v131 = vadd.f32 %v106, %v129
      %132 = vst [vmem:[#allocation7] sm:$0xff] %v131
      %s133 = scalar_lea.vmem [#allocation7], 8
      %v134 = vld [vmem:[%s133] sm:$0xff]
      %135 = vmatpush.msra.mxu0 0.0
      %136 = vmatpush.msra.mxu0 0.0
      %137 = vmatpush.msra.mxu0 0.0
      %138 = vmatpush.msra.mxu0 0.0
      %139 = vmatpush.msra.mxu0 0.0
      %140 = vmatpush.msra.mxu0 0.0
      %141 = vmatpush.msra.mxu0 0.0
      %142 = vmatpush.msra.mxu0 0.0
      %143 = vmatpush.msra.mxu0 0.0
      %144 = vmatpush.msra.mxu0 0.0
      %145 = vmatpush.msra.mxu0 0.0
      %146 = vmatpush.msra.mxu0 0.0
      %147 = vmatpush.msra.mxu0 0.0
      %148 = vmatpush.msra.mxu0 0.0
      %149 = vmatpush.msra.mxu0 %v85
      %150 = vmatpush.msra.mxu0 %v84
      %151 = vmatmul.f32.gmra.mxu0 %v109
      %v152 = vpop.f32.mrf.mxu0
      %v153 = vadd.f32 0.0, %v152
      %154 = vdwg.mxu0
      %v155 = vadd.f32 %v134, %v153
      %156 = vst [vmem:[%s133] sm:$0xff] %v155
      %s157 = scalar_lea.vmem [#allocation7], 16
      %v158 = vld [vmem:[%s157] sm:$0xff]
      %159 = vmatpush.msra.mxu0 0.0
      %160 = vmatpush.msra.mxu0 0.0
      %161 = vmatpush.msra.mxu0 0.0
      %162 = vmatpush.msra.mxu0 0.0
      %163 = vmatpush.msra.mxu0 0.0
      %164 = vmatpush.msra.mxu0 0.0
      %165 = vmatpush.msra.mxu0 0.0
      %166 = vmatpush.msra.mxu0 0.0
      %167 = vmatpush.msra.mxu0 0.0
      %168 = vmatpush.msra.mxu0 0.0
      %169 = vmatpush.msra.mxu0 0.0
      %170 = vmatpush.msra.mxu0 0.0
      %171 = vmatpush.msra.mxu0 0.0
      %172 = vmatpush.msra.mxu0 0.0
      %173 = vmatpush.msra.mxu0 %v105
      %174 = vmatpush.msra.mxu0 %v104
      %175 = vmatmul.f32.gmra.mxu0 %v109
      %v176 = vpop.f32.mrf.mxu0
      %v177 = vadd.f32 0.0, %v176
      %178 = vdwg.mxu0
      %v179 = vadd.f32 %v158, %v177
      %180 = vst [vmem:[%s157] sm:$0xff] %v179
    $region25: #{tpu_custom_call.1} parent=1 // pred_fallthru
      _
    %p181 = scmp.gt.s32.totalorder %s73, 16
    // Predicated region
    $region26: #{tpu_custom_call.1} parent=1 // pred_check
      %p182 = pneg %p181
    $region27: #{tpu_custom_call.1} parent=1 // pred_check_branch
      %184 = sbr.rel (%p182) target = $region29
    $region28: #{tpu_custom_call.1} parent=1 // pred_region
      %v185 = vld [vmem:[#allocation2] sm:$0xff]
      %v186 = vld [vmem:[#allocation2 + $0x8] sm:$0xff]
      %v187 = vld [vmem:[#allocation5] sm:$0xff]
      %v188 = vld [vmem:[#allocation5 + $0x8] sm:$0xff]
      %s189 = sadd.s32 %s72, 0
      %v190 = vlaneseq
      %v191 = vshrl.u32 %v190, 7
      %v192 = vadd.s32 %v191, 8
      %v193 = vstv %s189
      %v194 = vadd.s32 %v193, %v191
      %v195 = vadd.s32 %v193, %v192
      %vm196 = vcmp.lt.s32.totalorder %v194, 16
      %vm197 = vcmp.lt.s32.totalorder %v195, 16
      %v198 = vsel %vm196, %v185, 0.0
      %v199 = vsel %vm197, %v186, 0.0
      %v200 = vsel %vm196, %v187, 0.0
      %v201 = vsel %vm197, %v188, 0.0
      %v202 = vmul.f32 %v198, %v200
      %v203 = vmul.f32 %v199, %v201
      %v204 = vadd.f32 %v198, %v200
      %v205 = vadd.f32 %v199, %v201
      %v206 = vlog2.pop %v198
      %v207 = vmul.f32 %v206, 0.6931472
      %v208 = vlog2.pop %v199
      %v209 = vmul.f32 %v208, 0.6931472
      %v210 = vmax.f32 %v207, -100.0
      %v211 = vmax.f32 %v209, -100.0
      %v212 = vsub.f32 1.0, %v198
      %v213 = vsub.f32 1.0, %v199
      %v214 = vlog2.pop %v212
      %v215 = vmul.f32 %v214, 0.6931472
      %v216 = vlog2.pop %v213
      %v217 = vmul.f32 %v216, 0.6931472
      %v218 = vmax.f32 %v215, -100.0
      %v219 = vmax.f32 %v217, -100.0
      %v220 = vsub.f32 %v210, %v218
      %v221 = vsub.f32 %v211, %v219
      %v222 = vmul.f32 %v200, %v220
      %v223 = vmul.f32 %v201, %v221
      %v224 = vadd.f32 %v222, %v218
      %v225 = vadd.f32 %v223, %v219
      %v226 = vld [vmem:[#allocation7] sm:$0xff]
      %vm227 = vcmask 130048
      %v229 = vsel %vm227, 0.125, 0
      %231 = vmatpush.msra.mxu0 0.0
      %232 = vmatpush.msra.mxu0 0.0
      %233 = vmatpush.msra.mxu0 0.0
      %234 = vmatpush.msra.mxu0 0.0
      %235 = vmatpush.msra.mxu0 0.0
      %236 = vmatpush.msra.mxu0 0.0
      %237 = vmatpush.msra.mxu0 0.0
      %238 = vmatpush.msra.mxu0 0.0
      %239 = vmatpush.msra.mxu0 0.0
      %240 = vmatpush.msra.mxu0 0.0
      %241 = vmatpush.msra.mxu0 0.0
      %242 = vmatpush.msra.mxu0 0.0
      %243 = vmatpush.msra.mxu0 0.0
      %244 = vmatpush.msra.mxu0 0.0
      %245 = vmatpush.msra.mxu0 %v203
      %246 = vmatpush.msra.mxu0 %v202
      %247 = vmatmul.f32.gmra.mxu0 %v229
      %v248 = vpop.f32.mrf.mxu0
      %v249 = vadd.f32 0.0, %v248
      %250 = vdwg.mxu0
      %v251 = vadd.f32 %v226, %v249
      %252 = vst [vmem:[#allocation7] sm:$0xff] %v251
      %s253 = scalar_lea.vmem [#allocation7], 8
      %v254 = vld [vmem:[%s253] sm:$0xff]
      %255 = vmatpush.msra.mxu0 0.0
      %256 = vmatpush.msra.mxu0 0.0
      %257 = vmatpush.msra.mxu0 0.0
      %258 = vmatpush.msra.mxu0 0.0
      %259 = vmatpush.msra.mxu0 0.0
      %260 = vmatpush.msra.mxu0 0.0
      %261 = vmatpush.msra.mxu0 0.0
      %262 = vmatpush.msra.mxu0 0.0
      %263 = vmatpush.msra.mxu0 0.0
      %264 = vmatpush.msra.mxu0 0.0
      %265 = vmatpush.msra.mxu0 0.0
      %266 = vmatpush.msra.mxu0 0.0
      %267 = vmatpush.msra.mxu0 0.0
      %268 = vmatpush.msra.mxu0 0.0
      %269 = vmatpush.msra.mxu0 %v205
      %270 = vmatpush.msra.mxu0 %v204
      %271 = vmatmul.f32.gmra.mxu0 %v229
      %v272 = vpop.f32.mrf.mxu0
      %v273 = vadd.f32 0.0, %v272
      %274 = vdwg.mxu0
      %v275 = vadd.f32 %v254, %v273
      %276 = vst [vmem:[%s253] sm:$0xff] %v275
      %s277 = scalar_lea.vmem [#allocation7], 16
      %v278 = vld [vmem:[%s277] sm:$0xff]
      %279 = vmatpush.msra.mxu0 0.0
      %280 = vmatpush.msra.mxu0 0.0
      %281 = vmatpush.msra.mxu0 0.0
      %282 = vmatpush.msra.mxu0 0.0
      %283 = vmatpush.msra.mxu0 0.0
      %284 = vmatpush.msra.mxu0 0.0
      %285 = vmatpush.msra.mxu0 0.0
      %286 = vmatpush.msra.mxu0 0.0
      %287 = vmatpush.msra.mxu0 0.0
      %288 = vmatpush.msra.mxu0 0.0
      %289 = vmatpush.msra.mxu0 0.0
      %290 = vmatpush.msra.mxu0 0.0
      %291 = vmatpush.msra.mxu0 0.0
      %292 = vmatpush.msra.mxu0 0.0
      %293 = vmatpush.msra.mxu0 %v225
      %294 = vmatpush.msra.mxu0 %v224
      %295 = vmatmul.f32.gmra.mxu0 %v229
      %v296 = vpop.f32.mrf.mxu0
      %v297 = vadd.f32 0.0, %v296
      %298 = vdwg.mxu0
      %v299 = vadd.f32 %v278, %v297
      %300 = vst [vmem:[%s277] sm:$0xff] %v299
    $region29: #{tpu_custom_call.1} parent=1 // pred_fallthru
      _
    // Predicated region
    $region30: #{tpu_custom_call.1} parent=1 // pred_check
      _
    $region31: #{tpu_custom_call.1} parent=1 // pred_check_branch
      %302 = sbr.rel (0) target = $region33
    $region32: #{tpu_custom_call.1} parent=1 // pred_region
      %304 = vsyncadd [#allocation4], 0
      %s305 = sshll.u32 [#allocation7], 4
      %s306 = int_to_ptr.vmem [resolvable:$true] %s305
      %s307 = sshll.u32 %s2, 4
      %s308 = int_to_ptr.hbm [resolvable:$true] %s307
      %313 = dma.vmem_to_hbm [thread:$0]  %s306, 384, %s308, [#allocation4], 128, 128, 8
    $region33: #{tpu_custom_call.1} parent=1 // pred_fallthru
      _
    // Predicated region
    $region34: #{tpu_custom_call.1} parent=1 // pred_check
      _
    $region35: #{tpu_custom_call.1} parent=1 // pred_check_branch
      %315 = sbr.rel (0) target = $region37
    $region36: #{tpu_custom_call.1} parent=1 // pred_region
      %317 = dma.done [#allocation4], 384
    $region37: #{tpu_custom_call.1} parent=1 // pred_fallthru
      _
    %318 = vsyncpa [#allocation3], 1
    %319 = vsyncpa [#allocation6], 1
    %320 = vsyncpa [#allocation4], 1

</llo_original>
